<compile_context>
chip_gen: v7x
topology: tpu7x:2x2x1
jax: 0.10.0
libtpu: 0.0.40
codegen_flags: <defaults>
</compile_context>

<pallas_src>
import jax
import jax.numpy as jnp
from jax import lax
from jax.experimental import pallas as pl
from jax.experimental.pallas import tpu as pltpu


def _round_up(v, m):
    return ((int(v) + int(m) - 1) // int(m)) * int(m)


def _accumulate(batch_ref, x_ref, acc_ref):
    """Shared body: acc_ref (B, tile_f) += one_hot(batch_tile) @ x_tile."""
    i = pl.program_id(1)                      # node (reduction) axis
    tile_n = x_ref.shape[0]
    B = acc_ref.shape[0]

    @pl.when(i == 0)
    def _():
        acc_ref[...] = jnp.zeros_like(acc_ref)

    b_ids = batch_ref[...]                    # (1, tile_n) int32
    graph_iota = lax.broadcasted_iota(jnp.int32, (B, tile_n), 0)
    # one_hot[g, n] = 1 iff node n belongs to graph g; exact 0/1 in x's dtype.
    # Out-of-range padding ids (== batch_size) never match -> zero columns.
    one_hot = (graph_iota == b_ids).astype(x_ref.dtype)

    acc_ref[...] += jnp.dot(
        one_hot, x_ref[...], preferred_element_type=jnp.float32
    )


def _kernel_direct(batch_ref, x_ref, o_ref):
    # f32 output: accumulate straight into the resident output block.
    _accumulate(batch_ref, x_ref, o_ref)


def _kernel_scratch(batch_ref, x_ref, o_ref, acc_ref):
    # low-precision output: accumulate in an f32 scratch, cast at the end.
    _accumulate(batch_ref, x_ref, acc_ref)

    @pl.when(pl.program_id(1) == pl.num_programs(1) - 1)
    def _():
        o_ref[...] = acc_ref[...].astype(o_ref.dtype)


def global_add_pool(x, batch, batch_size, *, tile_n=512, tile_f=512):
    """Pallas equivalent of torch_geometric.nn.global_add_pool(x, batch, batch_size).

    x:          (N, F) float array of node features
    batch:      (N,) int graph-id per node, values in [0, batch_size)
    batch_size: static int B
    """
    N, F = x.shape
    out_dtype = x.dtype
    itemsize = jnp.dtype(x.dtype).itemsize
    B = int(batch_size)

    # Feature tiling: lane-dense (multiple of 128), F padded to a tile multiple.
    tile_f = _round_up(min(int(tile_f), _round_up(F, 128)), 128)
    F_pad = _round_up(F, tile_f)

    # Node tiling: tile_n is a multiple of 128 so the (1, tile_n) batch-id
    # block is lane-aligned; N padded to a tile multiple.
    tile_n = _round_up(min(int(tile_n), _round_up(N, 128)), 128)
    N_pad = _round_up(N, tile_n)

    x_p = x
    if (N_pad, F_pad) != (N, F):
        x_p = jnp.pad(x, ((0, N_pad - N), (0, F_pad - F)))

    batch_p = batch.astype(jnp.int32)
    if N_pad != N:
        # Padding rows get an out-of-range graph id -> one-hot is exactly zero.
        batch_p = jnp.pad(batch_p, (0, N_pad - N), constant_values=B)
    batch_2d = batch_p.reshape(1, N_pad)

    grid = (F_pad // tile_f, N_pad // tile_n)   # (parallel F, arbitrary N)

    in_specs = [
        # per-step batch-id tile (tiny; re-fetched per F tile, negligible)
        pl.BlockSpec((1, tile_n), lambda f, i: (0, i)),
        # node-feature tile
        pl.BlockSpec((tile_n, tile_f), lambda f, i: (i, f)),
    ]
    out_spec = pl.BlockSpec((B, tile_f), lambda f, i: (0, f))

    if out_dtype == jnp.float32:
        kernel = _kernel_direct
        scratch_shapes = []
    else:
        kernel = _kernel_scratch
        scratch_shapes = [pltpu.VMEM((B, tile_f), jnp.float32)]

    # VMEM budget: double-buffered x / batch tiles + output block + scratch +
    # in-kernel one-hot intermediates, with 2x headroom; clamped to stay safe
    # on v7x's 64 MiB physical VMEM while fine on v5e/v6e.
    est = (
        2 * tile_n * tile_f * itemsize          # x tiles (double buffered)
        + 2 * tile_n * 4                        # batch-id tiles
        + 2 * B * tile_f * itemsize             # output block
        + B * tile_f * 4                        # f32 scratch (worst case)
        + 2 * B * tile_n * 4                    # iota + one-hot temporaries
    )
    vmem_limit = int(max(32 * 2**20, min(2 * est, 64 * 2**20)))

    out = pl.pallas_call(
        kernel,
        out_shape=jax.ShapeDtypeStruct((B, F_pad), out_dtype),
        grid_spec=pltpu.PrefetchScalarGridSpec(
            num_scalar_prefetch=0,
            grid=grid,
            in_specs=in_specs,
            out_specs=out_spec,
            scratch_shapes=scratch_shapes,
        ),
        compiler_params=pltpu.CompilerParams(
            # F axis can be megacore-sharded; node axis is the reduction.
            dimension_semantics=("parallel", "arbitrary"),
            vmem_limit_bytes=vmem_limit,
        ),
    )(batch_2d, x_p)

    if F_pad != F:
        out = out[:, :F]
    return out


class GlobalAddPool:
    """JAX/Pallas port of GOOD.networks.models.Pooling.GlobalAddPool."""

    def __init__(self, **kwargs):
        pass  # no parameters

    def __call__(self, x, batch, batch_size=None, edge_index=None, edge_mask=None):
        if batch_size is None:
            # NOTE: forces a device->host sync and a recompile per distinct
            # value; pass a static batch_size in hot paths.
            batch_size = int(batch[-1]) + 1
        # TODO(synk): edge_mask/edge_index scatter_mean node-masking branch not
        # implemented (unused in the default forward path).
        return global_add_pool(x, batch, batch_size)


def _reference_add_pool(x, batch, B):
    """Pure-JAX reference: one-hot segment sum in f32."""
    one_hot = (batch[:, None] == jnp.arange(B)[None, :]).astype(jnp.float32)
    return jnp.einsum("nb,nf->bf", one_hot, x.astype(jnp.float32))


if __name__ == "__main__":
    key = jax.random.PRNGKey(0)
    k1, _ = jax.random.split(key)

    # Small, non-aligned shapes: exercises N/F padding, lane-dense F tiling.
    N, F, B = 300, 160, 4
    x = jax.random.normal(k1, (N, F), dtype=jnp.float32)
    sizes = jnp.array([80, 70, 90, 60], dtype=jnp.int32)          # sums to 300
    batch = jnp.repeat(jnp.arange(B, dtype=jnp.int32), sizes,
                       total_repeat_length=N)

    ref = _reference_add_pool(x, batch, B)

    # 1) Module path (default large tiles, f32 direct-accumulate kernel).
    pool = GlobalAddPool()
    out = jax.block_until_ready(pool(x, batch, batch_size=B))
    assert out.shape == (B, F)
    assert jnp.allclose(out, ref, atol=1e-4, rtol=1e-4)

    # 2) Small tiles: multi-step node reduction + multiple parallel F tiles.
    out2 = jax.block_until_ready(
        global_add_pool(x, batch, B, tile_n=128, tile_f=128))
    assert jnp.allclose(out2, ref, atol=1e-4, rtol=1e-4)

    # 3) bf16 inputs: native-dtype MXU feed + f32 scratch accumulator path.
    x_bf = x.astype(jnp.bfloat16)
    out3 = jax.block_until_ready(global_add_pool(x_bf, batch, B))
    ref_bf = _reference_add_pool(x_bf, batch, B)
    assert out3.dtype == jnp.bfloat16
    assert jnp.allclose(out3.astype(jnp.float32), ref_bf, atol=0.2, rtol=2e-2)

    print("KERNEL_OK")
</pallas_src>

<mosaic_0001>
module attributes {stable_mosaic.version = 11 : i64} {
  func.func @_kernel_direct(%arg0: i32, %arg1: i32, %arg2: memref<1x384xi32, #tpu.memory_space<vmem>>, %arg3: memref<384x256xf32, #tpu.memory_space<vmem>>, %arg4: memref<4x256xf32, #tpu.memory_space<vmem>>) attributes {dimension_semantics = [#tpu.dimension_semantics<parallel>, #tpu.dimension_semantics<arbitrary>], iteration_bounds = array<i64: 1, 1>, scalar_prefetch = 0 : i64, scratch_operands = 0 : i64, tpu.core_type = #tpu.core_type<tc>, window_params = [{transform_indices = @transform_0, window_bounds = array<i64: 1, 384>}, {transform_indices = @transform_1, window_bounds = array<i64: 384, 256>}, {transform_indices = @transform_2, window_bounds = array<i64: 4, 256>}]} {
    %c0_i32 = arith.constant 0 : i32
    %0 = arith.cmpi eq, %arg1, %c0_i32 : i32
    %1 = arith.extui %0 : i1 to i32
    %c0_i32_0 = arith.constant 0 : i32
    %2 = arith.cmpi ne, %1, %c0_i32_0 : i32
    scf.if %2 {
      %cst_8 = arith.constant 0.000000e+00 : f32
      %14 = vector.broadcast %cst_8 : f32 to vector<4x256xf32>
      %c0_9 = arith.constant 0 : index
      %c0_10 = arith.constant 0 : index
      %15 = vector.load %arg4[%c0_9, %c0_10] : memref<4x256xf32, #tpu.memory_space<vmem>>, vector<4x256xf32>
      tpu.vector_store %arg4[%c0_9, %c0_10], %14 {strides = array<i32>} : memref<4x256xf32, #tpu.memory_space<vmem>>, vector<4x256xf32>,
    } else {
    }
    %c0 = arith.constant 0 : index
    %c0_1 = arith.constant 0 : index
    %3 = vector.load %arg2[%c0, %c0_1] : memref<1x384xi32, #tpu.memory_space<vmem>>, vector<1x384xi32>
    %4 = tpu.iota {dimensions = array<i32: 0>} : vector<4x384xi32>
    %5 = vector.broadcast %3 : vector<1x384xi32> to vector<4x384xi32>
    %6 = arith.cmpi eq, %4, %5 : vector<4x384xi32>
    %7 = arith.extui %6 : vector<4x384xi1> to vector<4x384xi32>
    %8 = arith.sitofp %7 : vector<4x384xi32> to vector<4x384xf32>
    %c0_2 = arith.constant 0 : index
    %c0_3 = arith.constant 0 : index
    %9 = vector.load %arg4[%c0_2, %c0_3] : memref<4x256xf32, #tpu.memory_space<vmem>>, vector<4x256xf32>
    %c0_4 = arith.constant 0 : index
    %c0_5 = arith.constant 0 : index
    %10 = vector.load %arg3[%c0_4, %c0_5] : memref<384x256xf32, #tpu.memory_space<vmem>>, vector<384x256xf32>
    %cst = arith.constant dense<0.000000e+00> : vector<4x256xf32>
    %11 = tpu.matmul %8, %10, %cst {dimension_numbers = #tpu.dot_dimension_numbers<[1], [0], [0], [1], [0, 0, 1, 1], [], []>} : vector<4x384xf32>, vector<384x256xf32>, vector<4x256xf32> -> vector<4x256xf32>
    %12 = arith.addf %9, %11 : vector<4x256xf32>
    %c0_6 = arith.constant 0 : index
    %c0_7 = arith.constant 0 : index
    %13 = vector.load %arg4[%c0_6, %c0_7] : memref<4x256xf32, #tpu.memory_space<vmem>>, vector<4x256xf32>
    tpu.vector_store %arg4[%c0_6, %c0_7], %12 {strides = array<i32>} : memref<4x256xf32, #tpu.memory_space<vmem>>, vector<4x256xf32>,
    return
  }
  func.func @transform_0(%arg0: i32, %arg1: i32) -> (i32, i32) {
    %c0_i32 = arith.constant 0 : i32
    %c0_i32_0 = arith.constant 0 : i32
    return %c0_i32, %arg1 : i32, i32
  }
  func.func @transform_1(%arg0: i32, %arg1: i32) -> (i32, i32) {
    %c0_i32 = arith.constant 0 : i32
    return %arg1, %arg0 : i32, i32
  }
  func.func @transform_2(%arg0: i32, %arg1: i32) -> (i32, i32) {
    %c0_i32 = arith.constant 0 : i32
    %c0_i32_0 = arith.constant 0 : i32
    return %c0_i32, %arg0 : i32, i32
  }
}

</mosaic_0001>

<llo_original>
// kernel: tpu_custom_call.1
$region0: #{tpu_custom_call.1}
  #allocation0 [shape = 'u32[]', space=smem, size = 0x4, offset = 0x4, fixed_abs, tag = 'smem constant byte address 0x4 - core index']
  #allocation1 [shape = 'u32[144,128]{1,0:T(1,128)}', space=vmem, size = 0x12000, scoped, tag = 'internal scratch']
  %s0 = inlined_call_operand.hbm [shape: s32[1,384], index: 0, kind: input, shape index: {}]
  %s1 = inlined_call_operand.hbm [shape: f32[384,256], index: 1, kind: input, shape index: {}]
  %s2 = inlined_call_operand.hbm [shape: f32[4,256], index: 2, kind: output, shape index: {}]
  %s3 = sld [smem:[#allocation0]]
  $region30: #{tpu_custom_call.1} parent=0
    _
  %s5 = ssub.s32 1, %s3
  %s6 = scalar_select 0, %s5, %s3
  $region1: #{tpu_custom_call.1} parent=0
    #allocation2 [shape = 'u8[1536]{0}', space=vmem, size = 0x800, scoped, tag = 'input window, operand 0, single buffered']
    #allocation3 [shape = 's32[1]{0}', space=sflag, size = 0x4, scoped, tag = 'scoped memory for tpu_custom_call.1']
    #allocation4 [shape = 's32[1]{0}', space=sflag, size = 0x4, scoped, tag = 'scoped memory for tpu_custom_call.1']
    #allocation5 [shape = 'u8[393216]{0}', space=vmem, size = 0x60000, scoped, tag = 'input window, operand 1, single buffered']
    #allocation6 [shape = 's32[1]{0}', space=sflag, size = 0x4, scoped, tag = 'scoped memory for tpu_custom_call.1']
    #allocation7 [shape = 'u8[4096]{0}', space=vmem, size = 0x1000, scoped, tag = 'output window, operand 0, single buffered']
    %7 = vsyncpa [#allocation3], 0
    %8 = vsyncpa [#allocation6], 0
    %9 = vsyncpa [#allocation4], 0
    // Predicated region
    $region2: #{tpu_custom_call.1} parent=1 // pred_check
      _
    $region3: #{tpu_custom_call.1} parent=1 // pred_check_branch
      %11 = sbr.rel (0) target = $region5
    $region4: #{tpu_custom_call.1} parent=1 // pred_region
      %s13 = ssub.s32 48, 48
      %14 = vsyncadd [#allocation3], %s13
      %s16 = sshll.u32 [#allocation2], 4
      %s17 = int_to_ptr.vmem [resolvable:$true] %s16
      %19 = dma.hbm_to_vmem [thread:$0]  %s0, 48, %s17, [#allocation3]
    $region5: #{tpu_custom_call.1} parent=1 // pred_fallthru
      _
    // Predicated region
    $region6: #{tpu_custom_call.1} parent=1 // pred_check
      _
    $region7: #{tpu_custom_call.1} parent=1 // pred_check_branch
      %21 = sbr.rel (0) target = $region9
    $region8: #{tpu_custom_call.1} parent=1 // pred_region
      %s23 = ssub.s32 12288, 12288
      %24 = vsyncadd [#allocation6], %s23
      %s25 = sshll.u32 [#allocation5], 4
      %s26 = int_to_ptr.vmem [resolvable:$true] %s25
      %31 = dma.hbm_to_vmem [thread:$0]  %s1, 12288, %s26, [#allocation6], 256, 256, 16
    $region9: #{tpu_custom_call.1} parent=1 // pred_fallthru
      _
    // Predicated region
    $region10: #{tpu_custom_call.1} parent=1 // pred_check
      _
    $region11: #{tpu_custom_call.1} parent=1 // pred_check_branch
      %33 = sbr.rel (0) target = $region13
    $region12: #{tpu_custom_call.1} parent=1 // pred_region
      %34 = dma.done [#allocation3], 48
    $region13: #{tpu_custom_call.1} parent=1 // pred_fallthru
      _
    // Predicated region
    $region14: #{tpu_custom_call.1} parent=1 // pred_check
      _
    $region15: #{tpu_custom_call.1} parent=1 // pred_check_branch
      %36 = sbr.rel (0) target = $region17
    $region16: #{tpu_custom_call.1} parent=1 // pred_region
      %37 = dma.done [#allocation6], 12288
    $region17: #{tpu_custom_call.1} parent=1 // pred_fallthru
      _
    %p38 = scmp.eq.s32.totalorder 0, 0
    // Predicated region
    $region18: #{tpu_custom_call.1} parent=1 // pred_check
      %p39 = pneg %p38
    $region19: #{tpu_custom_call.1} parent=1 // pred_check_branch
      %41 = sbr.rel (%p39) target = $region21
    $region20: #{tpu_custom_call.1} parent=1 // pred_region
      %42 = vst [vmem:[#allocation7] sm:$0xff] 0.0
    $region21: #{tpu_custom_call.1} parent=1 // pred_fallthru
      _
    %v43 = vld [vmem:[#allocation2] sm:$0x7]
    %v44 = vlaneseq
    %v45 = vshrl.u32 %v44, 7
    %v46 = vlaneseq
    %v47 = vshrl.u32 %v46, 7
    %v48 = vsub.s32 0, %v47
    %v49 = vrot.slane %v43, %v48
    %v50 = vlaneseq
    %v51 = vshrl.u32 %v50, 7
    %v52 = vsub.s32 1, %v51
    %v53 = vrot.slane %v43, %v52
    %v54 = vlaneseq
    %v55 = vshrl.u32 %v54, 7
    %v56 = vsub.s32 2, %v55
    %v57 = vrot.slane %v43, %v56
    %vm58 = vcmp.eq.s32.totalorder %v45, %v49
    %vm59 = vcmp.eq.s32.totalorder %v45, %v53
    %vm60 = vcmp.eq.s32.totalorder %v45, %v57
    %v61 = vsel %vm58, 1, 0
    %v62 = vsel %vm59, 1, 0
    %v63 = vsel %vm60, 1, 0
    %v64 = vcvt.s32.f32 %v61
    %v65 = vcvt.s32.f32 %v62
    %v66 = vcvt.s32.f32 %v63
    %v67 = vld [vmem:[#allocation7] sm:$0xff]
    %v68 = vld [vmem:[#allocation5] sm:$0xff]
    %v69 = vld [vmem:[#allocation5 + $0x8] sm:$0xff]
    %v70 = vld [vmem:[#allocation5 + $0x10] sm:$0xff]
    %v71 = vld [vmem:[#allocation5 + $0x18] sm:$0xff]
    %v72 = vld [vmem:[#allocation5 + $0x20] sm:$0xff]
    %v73 = vld [vmem:[#allocation5 + $0x28] sm:$0xff]
    %v74 = vld [vmem:[#allocation5 + $0x30] sm:$0xff]
    %v75 = vld [vmem:[#allocation5 + $0x38] sm:$0xff]
    %v76 = vld [vmem:[#allocation5 + $0x40] sm:$0xff]
    %v77 = vld [vmem:[#allocation5 + $0x48] sm:$0xff]
    %v78 = vld [vmem:[#allocation5 + $0x50] sm:$0xff]
    %v79 = vld [vmem:[#allocation5 + $0x58] sm:$0xff]
    %v80 = vld [vmem:[#allocation5 + $0x60] sm:$0xff]
    %v81 = vld [vmem:[#allocation5 + $0x68] sm:$0xff]
    %v82 = vld [vmem:[#allocation5 + $0x70] sm:$0xff]
    %v83 = vld [vmem:[#allocation5 + $0x78] sm:$0xff]
    %v84 = vld [vmem:[#allocation5 + $0x80] sm:$0xff]
    %v85 = vld [vmem:[#allocation5 + $0x88] sm:$0xff]
    %v86 = vld [vmem:[#allocation5 + $0x90] sm:$0xff]
    %v87 = vld [vmem:[#allocation5 + $0x98] sm:$0xff]
    %v88 = vld [vmem:[#allocation5 + $0xa0] sm:$0xff]
    %v89 = vld [vmem:[#allocation5 + $0xa8] sm:$0xff]
    %v90 = vld [vmem:[#allocation5 + $0xb0] sm:$0xff]
    %v91 = vld [vmem:[#allocation5 + $0xb8] sm:$0xff]
    %v92 = vld [vmem:[#allocation5 + $0xc0] sm:$0xff]
    %v93 = vld [vmem:[#allocation5 + $0xc8] sm:$0xff]
    %v94 = vld [vmem:[#allocation5 + $0xd0] sm:$0xff]
    %v95 = vld [vmem:[#allocation5 + $0xd8] sm:$0xff]
    %v96 = vld [vmem:[#allocation5 + $0xe0] sm:$0xff]
    %v97 = vld [vmem:[#allocation5 + $0xe8] sm:$0xff]
    %v98 = vld [vmem:[#allocation5 + $0xf0] sm:$0xff]
    %v99 = vld [vmem:[#allocation5 + $0xf8] sm:$0xff]
    %v100 = vld [vmem:[#allocation5 + $0x100] sm:$0xff]
    %v101 = vld [vmem:[#allocation5 + $0x108] sm:$0xff]
    %v102 = vld [vmem:[#allocation5 + $0x110] sm:$0xff]
    %v103 = vld [vmem:[#allocation5 + $0x118] sm:$0xff]
    %v104 = vld [vmem:[#allocation5 + $0x120] sm:$0xff]
    %v105 = vld [vmem:[#allocation5 + $0x128] sm:$0xff]
    %v106 = vld [vmem:[#allocation5 + $0x130] sm:$0xff]
    %v107 = vld [vmem:[#allocation5 + $0x138] sm:$0xff]
    %v108 = vld [vmem:[#allocation5 + $0x140] sm:$0xff]
    %v109 = vld [vmem:[#allocation5 + $0x148] sm:$0xff]
    %v110 = vld [vmem:[#allocation5 + $0x150] sm:$0xff]
    %v111 = vld [vmem:[#allocation5 + $0x158] sm:$0xff]
    %v112 = vld [vmem:[#allocation5 + $0x160] sm:$0xff]
    %v113 = vld [vmem:[#allocation5 + $0x168] sm:$0xff]
    %v114 = vld [vmem:[#allocation5 + $0x170] sm:$0xff]
    %v115 = vld [vmem:[#allocation5 + $0x178] sm:$0xff]
    %v116 = vld [vmem:[#allocation5 + $0x180] sm:$0xff]
    %v117 = vld [vmem:[#allocation5 + $0x188] sm:$0xff]
    %v118 = vld [vmem:[#allocation5 + $0x190] sm:$0xff]
    %v119 = vld [vmem:[#allocation5 + $0x198] sm:$0xff]
    %v120 = vld [vmem:[#allocation5 + $0x1a0] sm:$0xff]
    %v121 = vld [vmem:[#allocation5 + $0x1a8] sm:$0xff]
    %v122 = vld [vmem:[#allocation5 + $0x1b0] sm:$0xff]
    %v123 = vld [vmem:[#allocation5 + $0x1b8] sm:$0xff]
    %v124 = vld [vmem:[#allocation5 + $0x1c0] sm:$0xff]
    %v125 = vld [vmem:[#allocation5 + $0x1c8] sm:$0xff]
    %v126 = vld [vmem:[#allocation5 + $0x1d0] sm:$0xff]
    %v127 = vld [vmem:[#allocation5 + $0x1d8] sm:$0xff]
    %v128 = vld [vmem:[#allocation5 + $0x1e0] sm:$0xff]
    %v129 = vld [vmem:[#allocation5 + $0x1e8] sm:$0xff]
    %v130 = vld [vmem:[#allocation5 + $0x1f0] sm:$0xff]
    %v131 = vld [vmem:[#allocation5 + $0x1f8] sm:$0xff]
    %v132 = vld [vmem:[#allocation5 + $0x200] sm:$0xff]
    %v133 = vld [vmem:[#allocation5 + $0x208] sm:$0xff]
    %v134 = vld [vmem:[#allocation5 + $0x210] sm:$0xff]
    %v135 = vld [vmem:[#allocation5 + $0x218] sm:$0xff]
    %v136 = vld [vmem:[#allocation5 + $0x220] sm:$0xff]
    %v137 = vld [vmem:[#allocation5 + $0x228] sm:$0xff]
    %v138 = vld [vmem:[#allocation5 + $0x230] sm:$0xff]
    %v139 = vld [vmem:[#allocation5 + $0x238] sm:$0xff]
    %v140 = vld [vmem:[#allocation5 + $0x240] sm:$0xff]
    %v141 = vld [vmem:[#allocation5 + $0x248] sm:$0xff]
    %v142 = vld [vmem:[#allocation5 + $0x250] sm:$0xff]
    %v143 = vld [vmem:[#allocation5 + $0x258] sm:$0xff]
    %v144 = vld [vmem:[#allocation5 + $0x260] sm:$0xff]
    %v145 = vld [vmem:[#allocation5 + $0x268] sm:$0xff]
    %v146 = vld [vmem:[#allocation5 + $0x270] sm:$0xff]
    %v147 = vld [vmem:[#allocation5 + $0x278] sm:$0xff]
    %v148 = vld [vmem:[#allocation5 + $0x280] sm:$0xff]
    %v149 = vld [vmem:[#allocation5 + $0x288] sm:$0xff]
    %v150 = vld [vmem:[#allocation5 + $0x290] sm:$0xff]
    %v151 = vld [vmem:[#allocation5 + $0x298] sm:$0xff]
    %v152 = vld [vmem:[#allocation5 + $0x2a0] sm:$0xff]
    %v153 = vld [vmem:[#allocation5 + $0x2a8] sm:$0xff]
    %v154 = vld [vmem:[#allocation5 + $0x2b0] sm:$0xff]
    %v155 = vld [vmem:[#allocation5 + $0x2b8] sm:$0xff]
    %v156 = vld [vmem:[#allocation5 + $0x2c0] sm:$0xff]
    %v157 = vld [vmem:[#allocation5 + $0x2c8] sm:$0xff]
    %v158 = vld [vmem:[#allocation5 + $0x2d0] sm:$0xff]
    %v159 = vld [vmem:[#allocation5 + $0x2d8] sm:$0xff]
    %v160 = vld [vmem:[#allocation5 + $0x2e0] sm:$0xff]
    %v161 = vld [vmem:[#allocation5 + $0x2e8] sm:$0xff]
    %v162 = vld [vmem:[#allocation5 + $0x2f0] sm:$0xff]
    %v163 = vld [vmem:[#allocation5 + $0x2f8] sm:$0xff]
    %164 = vmatprep.subr.mxu0 %v69
    %165 = vmatpush1.msra.mxu0 %v68
    %166 = vmatprep.subr.mxu0 %v71
    %167 = vmatpush1.msra.mxu0 %v70
    %168 = vmatprep.subr.mxu0 %v73
    %169 = vmatpush1.msra.mxu0 %v72
    %170 = vmatprep.subr.mxu0 %v75
    %171 = vmatpush1.msra.mxu0 %v74
    %172 = vmatprep.subr.mxu0 %v77
    %173 = vmatpush1.msra.mxu0 %v76
    %174 = vmatprep.subr.mxu0 %v79
    %175 = vmatpush1.msra.mxu0 %v78
    %176 = vmatprep.subr.mxu0 %v81
    %177 = vmatpush1.msra.mxu0 %v80
    %178 = vmatprep.subr.mxu0 %v83
    %179 = vmatpush1.msra.mxu0 %v82
    %180 = vmatprep.subr.mxu0 %v85
    %181 = vmatpush1.msra.mxu0 %v84
    %182 = vmatprep.subr.mxu0 %v87
    %183 = vmatpush1.msra.mxu0 %v86
    %184 = vmatprep.subr.mxu0 %v89
    %185 = vmatpush1.msra.mxu0 %v88
    %186 = vmatprep.subr.mxu0 %v91
    %187 = vmatpush1.msra.mxu0 %v90
    %188 = vmatprep.subr.mxu0 %v93
    %189 = vmatpush1.msra.mxu0 %v92
    %190 = vmatprep.subr.mxu0 %v95
    %191 = vmatpush1.msra.mxu0 %v94
    %192 = vmatprep.subr.mxu0 %v97
    %193 = vmatpush1.msra.mxu0 %v96
    %194 = vmatprep.subr.mxu0 %v99
    %195 = vmatpush1.msra.mxu0 %v98
    %196 = vmatprep.subr.mxu0 %v101
    %197 = vmatpush1.msra.mxu0 %v100
    %198 = vmatprep.subr.mxu0 %v103
    %199 = vmatpush1.msra.mxu0 %v102
    %200 = vmatprep.subr.mxu0 %v105
    %201 = vmatpush1.msra.mxu0 %v104
    %202 = vmatprep.subr.mxu0 %v107
    %203 = vmatpush1.msra.mxu0 %v106
    %204 = vmatprep.subr.mxu0 %v109
    %205 = vmatpush1.msra.mxu0 %v108
    %206 = vmatprep.subr.mxu0 %v111
    %207 = vmatpush1.msra.mxu0 %v110
    %208 = vmatprep.subr.mxu0 %v113
    %209 = vmatpush1.msra.mxu0 %v112
    %210 = vmatprep.subr.mxu0 %v115
    %211 = vmatpush1.msra.mxu0 %v114
    %212 = vmatprep.subr.mxu0 %v117
    %213 = vmatpush1.msra.mxu0 %v116
    %214 = vmatprep.subr.mxu0 %v119
    %215 = vmatpush1.msra.mxu0 %v118
    %216 = vmatprep.subr.mxu0 %v121
    %217 = vmatpush1.msra.mxu0 %v120
    %218 = vmatprep.subr.mxu0 %v123
    %219 = vmatpush1.msra.mxu0 %v122
    %220 = vmatprep.subr.mxu0 %v125
    %221 = vmatpush1.msra.mxu0 %v124
    %222 = vmatprep.subr.mxu0 %v127
    %223 = vmatpush1.msra.mxu0 %v126
    %224 = vmatprep.subr.mxu0 %v129
    %225 = vmatpush1.msra.mxu0 %v128
    %226 = vmatprep.subr.mxu0 %v131
    %227 = vmatpush1.msra.mxu0 %v130
    %228 = vmatprep.mubr.f32.mxu0 %v65
    %229 = vmatmul.mubr.f32.gmra.mrb[0].mxu0 %v64
    %v230 = vpop.f32.mrb[0].mxu0
    %v231 = vadd.f32 0.0, %v230
    %v232 = vpop.f32.mrb[0].mxu0
    %v233 = vadd.f32 0.0, %v232
    %234 = vdwg.mxu0
    %235 = vmatprep.subr.mxu0 %v133
    %236 = vmatpush1.msra.mxu0 %v132
    %237 = vmatprep.subr.mxu0 %v135
    %238 = vmatpush1.msra.mxu0 %v134
    %239 = vmatprep.subr.mxu0 %v137
    %240 = vmatpush1.msra.mxu0 %v136
    %241 = vmatprep.subr.mxu0 %v139
    %242 = vmatpush1.msra.mxu0 %v138
    %243 = vmatprep.subr.mxu0 %v141
    %244 = vmatpush1.msra.mxu0 %v140
    %245 = vmatprep.subr.mxu0 %v143
    %246 = vmatpush1.msra.mxu0 %v142
    %247 = vmatprep.subr.mxu0 %v145
    %248 = vmatpush1.msra.mxu0 %v144
    %249 = vmatprep.subr.mxu0 %v147
    %250 = vmatpush1.msra.mxu0 %v146
    %251 = vmatprep.subr.mxu0 %v149
    %252 = vmatpush1.msra.mxu0 %v148
    %253 = vmatprep.subr.mxu0 %v151
    %254 = vmatpush1.msra.mxu0 %v150
    %255 = vmatprep.subr.mxu0 %v153
    %256 = vmatpush1.msra.mxu0 %v152
    %257 = vmatprep.subr.mxu0 %v155
    %258 = vmatpush1.msra.mxu0 %v154
    %259 = vmatprep.subr.mxu0 %v157
    %260 = vmatpush1.msra.mxu0 %v156
    %261 = vmatprep.subr.mxu0 %v159
    %262 = vmatpush1.msra.mxu0 %v158
    %263 = vmatprep.subr.mxu0 %v161
    %264 = vmatpush1.msra.mxu0 %v160
    %265 = vmatprep.subr.mxu0 %v163
    %266 = vmatpush1.msra.mxu0 %v162
    %267 = vmatprep.subr.mxu0 0.0
    %268 = vmatpush1.msra.mxu0 0.0
    %269 = vmatprep.subr.mxu0 0.0
    %270 = vmatpush1.msra.mxu0 0.0
    %271 = vmatprep.subr.mxu0 0.0
    %272 = vmatpush1.msra.mxu0 0.0
    %273 = vmatprep.subr.mxu0 0.0
    %274 = vmatpush1.msra.mxu0 0.0
    %275 = vmatprep.subr.mxu0 0.0
    %276 = vmatpush1.msra.mxu0 0.0
    %277 = vmatprep.subr.mxu0 0.0
    %278 = vmatpush1.msra.mxu0 0.0
    %279 = vmatprep.subr.mxu0 0.0
    %280 = vmatpush1.msra.mxu0 0.0
    %281 = vmatprep.subr.mxu0 0.0
    %282 = vmatpush1.msra.mxu0 0.0
    %283 = vmatprep.subr.mxu0 0.0
    %284 = vmatpush1.msra.mxu0 0.0
    %285 = vmatprep.subr.mxu0 0.0
    %286 = vmatpush1.msra.mxu0 0.0
    %287 = vmatprep.subr.mxu0 0.0
    %288 = vmatpush1.msra.mxu0 0.0
    %289 = vmatprep.subr.mxu0 0.0
    %290 = vmatpush1.msra.mxu0 0.0
    %291 = vmatprep.subr.mxu0 0.0
    %292 = vmatpush1.msra.mxu0 0.0
    %293 = vmatprep.subr.mxu0 0.0
    %294 = vmatpush1.msra.mxu0 0.0
    %295 = vmatprep.subr.mxu0 0.0
    %296 = vmatpush1.msra.mxu0 0.0
    %297 = vmatprep.subr.mxu0 0.0
    %298 = vmatpush1.msra.mxu0 0.0
    %299 = vmatprep.mubr.f32.mxu0 0.0
    %300 = vmatmul.mubr.f32.gmra.mrb[0].mxu0 %v66
    %v301 = vpop.f32.mrb[0].mxu0
    %v302 = vadd.f32 %v231, %v301
    %v303 = vpop.f32.mrb[0].mxu0
    %v304 = vadd.f32 %v233, %v303
    %305 = vdwg.mxu0
    %v308 = vcombine.low %v302, %v304
    %v310 = vadd.f32 %v67, %v308
    %311 = vst [vmem:[#allocation7] sm:$0xff] %v310
    // Predicated region
    $region22: #{tpu_custom_call.1} parent=1 // pred_check
      _
    $region23: #{tpu_custom_call.1} parent=1 // pred_check_branch
      %313 = sbr.rel (0) target = $region25
    $region24: #{tpu_custom_call.1} parent=1 // pred_region
      %s315 = ssub.s32 128, 128
      %316 = vsyncadd [#allocation4], %s315
      %s318 = sshll.u32 [#allocation7], 4
      %s319 = int_to_ptr.vmem [resolvable:$true] %s318
      %321 = dma.vmem_to_hbm [thread:$0]  %s319, 128, %s2, [#allocation4]
    $region25: #{tpu_custom_call.1} parent=1 // pred_fallthru
      _
    // Predicated region
    $region26: #{tpu_custom_call.1} parent=1 // pred_check
      _
    $region27: #{tpu_custom_call.1} parent=1 // pred_check_branch
      %323 = sbr.rel (0) target = $region29
    $region28: #{tpu_custom_call.1} parent=1 // pred_region
      %324 = dma.done [#allocation4], 128
    $region29: #{tpu_custom_call.1} parent=1 // pred_fallthru
      _
    %325 = vsyncpa [#allocation3], 1
    %326 = vsyncpa [#allocation6], 1
    %327 = vsyncpa [#allocation4], 1

</llo_original>
